<compile_context>
chip_gen: v7x
topology: tpu7x:2x2x1
jax: 0.10.0
libtpu: 0.0.40
codegen_flags: <defaults>
</compile_context>

<pallas_src>
import functools

import jax
import jax.numpy as jnp
from jax.experimental import pallas as pl
from jax.experimental.pallas import tpu as pltpu


# ----------------------------------------------------------------------------
# Kernel 1: single-pass path — whole (C, HW) slab resident in VMEM per batch.
# ----------------------------------------------------------------------------
def hdr_attention_slab_kernel(x_ref, w1_ref, b1_ref, w2_ref, b2_ref, o_ref, *, inv_hw):
    # x_ref/o_ref: (C, HW)   w1_ref: (Cr, C)  b1_ref: (Cr, 1)  w2_ref: (C, Cr)  b2_ref: (C, 1)
    x = x_ref[...].astype(jnp.float32)                                   # (C, HW)
    mean = jnp.sum(x, axis=-1, keepdims=True) * inv_hw                   # (C, 1)
    h = jnp.dot(w1_ref[...], mean, preferred_element_type=jnp.float32) + b1_ref[...]
    h = jnp.maximum(h, 0.0)                                              # (Cr, 1)
    a = jnp.dot(w2_ref[...], h, preferred_element_type=jnp.float32) + b2_ref[...]
    att = jax.nn.sigmoid(a)                                              # (C, 1)
    o_ref[...] = (x * att).astype(o_ref.dtype)


# ----------------------------------------------------------------------------
# Kernel 2: two-phase streaming path for slabs that do not fit VMEM.
# ----------------------------------------------------------------------------
def hdr_attention_tiled_kernel(x_ref, w1_ref, b1_ref, w2_ref, b2_ref, o_ref,
                               sum_ref, att_ref, *, inv_hw, nt, edge_valid):
    # x_ref/o_ref: (C, THW)  sum_ref/att_ref: (C, 1) f32 VMEM scratch
    # nt: static number of spatial tiles; edge_valid: valid lanes in the last tile
    # (None if THW divides HW exactly -> no masking needed).
    phase = pl.program_id(1)
    t = pl.program_id(2)

    @pl.when(jnp.logical_and(phase == 0, t == 0))
    def _init():
        sum_ref[...] = jnp.zeros_like(sum_ref)

    @pl.when(jnp.logical_and(phase == 0, t < nt - 1))
    def _reduce_full():
        x = x_ref[...].astype(jnp.float32)
        sum_ref[...] += jnp.sum(x, axis=-1, keepdims=True)

    @pl.when(jnp.logical_and(phase == 0, t == nt - 1))
    def _reduce_edge_and_finalize():
        x = x_ref[...].astype(jnp.float32)
        if edge_valid is not None:
            # Mask the out-of-bounds lanes of the partial edge tile (the DMA leaves
            # them unspecified); no host-side padding is ever materialized.
            lane = jax.lax.broadcasted_iota(jnp.int32, x.shape, 1)
            x = jnp.where(lane < edge_valid, x, 0.0)
        sum_ref[...] += jnp.sum(x, axis=-1, keepdims=True)
        # 1x1 conv -> ReLU -> 1x1 conv -> sigmoid, once per batch item.
        mean = sum_ref[...] * inv_hw                                      # true-HW mean
        h = jnp.dot(w1_ref[...], mean, preferred_element_type=jnp.float32) + b1_ref[...]
        h = jnp.maximum(h, 0.0)
        a = jnp.dot(w2_ref[...], h, preferred_element_type=jnp.float32) + b2_ref[...]
        att_ref[...] = jax.nn.sigmoid(a)

    @pl.when(phase == 1)
    def _apply():
        x = x_ref[...].astype(jnp.float32)
        o_ref[...] = (x * att_ref[...]).astype(o_ref.dtype)


# ----------------------------------------------------------------------------
# Wrapper
# ----------------------------------------------------------------------------
def hdr_attention(x_nchw, w1, b1, w2, b2, *,
                  target_block_bytes=6 * 1024 * 1024,
                  vmem_limit_bytes=48 * 1024 * 1024,
                  force_tiled=False):
    """x_nchw: (B, C, H, W); w1: (Cr, C, 1, 1); b1: (Cr,); w2: (C, Cr, 1, 1); b2: (C,).

    Defaults are safe on every TPU generation (v7x has only 64 MiB VMEM per core);
    on v5e/v6e (128 MiB VMEM) both knobs can be raised for larger cached slabs.
    """
    B, C, H, W = x_nchw.shape
    Cr = w1.shape[0]
    HW = H * W
    in_dtype = x_nchw.dtype
    dtype_bytes = jnp.dtype(in_dtype).itemsize

    x = x_nchw.reshape(B, C, HW)
    w1m = w1.reshape(Cr, C).astype(jnp.float32)      # (Cr, C)
    w2m = w2.reshape(C, Cr).astype(jnp.float32)      # (C, Cr)
    b1c = b1.reshape(Cr, 1).astype(jnp.float32)
    b2c = b2.reshape(C, 1).astype(jnp.float32)
    inv_hw = 1.0 / float(HW)

    weight_bytes = (Cr * C + C * Cr + Cr + C) * 4
    slab_bytes = C * HW * dtype_bytes

    # ---- single-pass path: whole per-batch slab resident in VMEM ----------------
    # Budget: 2x double-buffered input + 2x output blocks + elementwise temporaries
    # (conservative 8x factor) must fit the scoped VMEM limit.
    if (not force_tiled) and (slab_bytes * 8 + weight_bytes <= vmem_limit_bytes):
        kernel = functools.partial(hdr_attention_slab_kernel, inv_hw=inv_hw)
        out = pl.pallas_call(
            kernel,
            out_shape=jax.ShapeDtypeStruct((B, C, HW), in_dtype),
            grid_spec=pltpu.PrefetchScalarGridSpec(
                num_scalar_prefetch=0,
                grid=(B,),
                in_specs=[
                    pl.BlockSpec((None, C, HW), lambda b: (b, 0, 0)),   # x slab
                    pl.BlockSpec((Cr, C), lambda b: (0, 0)),            # W1 (resident)
                    pl.BlockSpec((Cr, 1), lambda b: (0, 0)),            # b1
                    pl.BlockSpec((C, Cr), lambda b: (0, 0)),            # W2
                    pl.BlockSpec((C, 1), lambda b: (0, 0)),             # b2
                ],
                out_specs=pl.BlockSpec((None, C, HW), lambda b: (b, 0, 0)),
            ),
            compiler_params=pltpu.CompilerParams(
                dimension_semantics=("parallel",),
                vmem_limit_bytes=vmem_limit_bytes,
            ),
        )(x, w1m, b1c, w2m, b2c)
        return out.reshape(B, C, H, W)

    # ---- two-phase streaming path -----------------------------------------------
    # Lane-dense spatial tile: a multiple of 128, ~target_block_bytes per block.
    thw = max(128, (target_block_bytes // max(1, C * dtype_bytes)) // 128 * 128)
    hw_ceil = ((HW + 127) // 128) * 128
    thw = min(thw, hw_ceil)
    if thw >= HW:
        thw = HW                      # single full-extent tile (any size is legal)
    nt = pl.cdiv(HW, thw)
    rem = HW - (nt - 1) * thw
    edge_valid = None if rem == thw else rem

    kernel = functools.partial(hdr_attention_tiled_kernel,
                               inv_hw=inv_hw, nt=nt, edge_valid=edge_valid)

    out = pl.pallas_call(
        kernel,
        out_shape=jax.ShapeDtypeStruct((B, C, HW), in_dtype),
        grid_spec=pltpu.PrefetchScalarGridSpec(
            num_scalar_prefetch=0,
            grid=(B, 2, nt),          # (batch, phase: 0=reduce / 1=apply, spatial tile)
            in_specs=[
                # x tile: leading batch dim squeezed -> kernel sees (C, THW)
                pl.BlockSpec((None, C, thw), lambda b, p, t: (b, 0, t)),
                pl.BlockSpec((Cr, C), lambda b, p, t: (0, 0)),   # W1 (resident)
                pl.BlockSpec((Cr, 1), lambda b, p, t: (0, 0)),   # b1
                pl.BlockSpec((C, Cr), lambda b, p, t: (0, 0)),   # W2
                pl.BlockSpec((C, 1), lambda b, p, t: (0, 0)),    # b2
            ],
            # Park the output block at tile 0 during the reduce phase so the first
            # writeback only happens after phase 1 has produced real data.
            out_specs=pl.BlockSpec((None, C, thw), lambda b, p, t: (b, 0, t * p)),
            scratch_shapes=[
                pltpu.VMEM((C, 1), jnp.float32),   # running channel sum
                pltpu.VMEM((C, 1), jnp.float32),   # per-channel sigmoid attention
            ],
        ),
        compiler_params=pltpu.CompilerParams(
            dimension_semantics=("parallel", "arbitrary", "arbitrary"),
            vmem_limit_bytes=vmem_limit_bytes,
        ),
    )(x, w1m, b1c, w2m, b2c)
    return out.reshape(B, C, H, W)


# ----------------------------------------------------------------------------
# Pure-JAX reference matching the PyTorch forward.
# ----------------------------------------------------------------------------
def _reference(x, w1, b1, w2, b2):
    B, C, H, W = x.shape
    Cr = w1.shape[0]
    avg = jnp.mean(x.astype(jnp.float32), axis=(2, 3))                    # (B, C)
    h = jnp.maximum(avg @ w1.reshape(Cr, C).T.astype(jnp.float32) + b1, 0.0)
    a = jax.nn.sigmoid(h @ w2.reshape(C, Cr).T.astype(jnp.float32) + b2)
    return (x.astype(jnp.float32) * a[:, :, None, None]).astype(x.dtype)


if __name__ == "__main__":
    key = jax.random.PRNGKey(0)
    kx, k1, k2, k3, k4, kx2 = jax.random.split(key, 6)

    B, C = 2, 16
    Cr = C // 8
    w1 = jax.random.normal(k1, (Cr, C, 1, 1), dtype=jnp.float32) * 0.1
    b1 = jax.random.normal(k2, (Cr,), dtype=jnp.float32) * 0.1
    w2 = jax.random.normal(k3, (C, Cr, 1, 1), dtype=jnp.float32) * 0.1
    b2 = jax.random.normal(k4, (C,), dtype=jnp.float32) * 0.1

    # --- case 1: small 128-aligned spatial size -> single-pass VMEM-slab path ----
    x1 = jax.random.normal(kx, (B, C, 16, 16), dtype=jnp.float32)
    out1 = jax.block_until_ready(hdr_attention(x1, w1, b1, w2, b2))
    ref1 = _reference(x1, w1, b1, w2, b2)
    assert out1.shape == x1.shape
    assert jnp.allclose(out1, ref1, atol=1e-5, rtol=1e-5), "mismatch vs reference (case 1)"

    # --- case 2: non-128-multiple spatial size (HW=400), still slab path ---------
    x2 = jax.random.normal(kx2, (B, C, 20, 20), dtype=jnp.float32)
    out2 = jax.block_until_ready(hdr_attention(x2, w1, b1, w2, b2))
    ref2 = _reference(x2, w1, b1, w2, b2)
    assert out2.shape == x2.shape
    assert jnp.allclose(out2, ref2, atol=1e-5, rtol=1e-5), "mismatch vs reference (case 2)"

    # --- case 3: forced tiled two-phase path with a masked partial edge tile ------
    # HW=400, 128-lane tiles -> 4 tiles, last tile has only 16 valid lanes; no
    # host-side pad/slice copies are made.
    out3 = jax.block_until_ready(
        hdr_attention(x2, w1, b1, w2, b2, force_tiled=True,
                      target_block_bytes=C * 128 * 4))
    assert out3.shape == x2.shape
    assert jnp.allclose(out3, ref2, atol=1e-5, rtol=1e-5), "mismatch vs reference (case 3)"

    print("KERNEL_OK")
</pallas_src>

<mosaic_0001>
module attributes {stable_mosaic.version = 11 : i64} {
  func.func @hdr_attention_slab_kernel(%arg0: i32, %arg1: memref<1x16x256xf32, #tpu.memory_space<vmem>>, %arg2: memref<2x16xf32, #tpu.memory_space<vmem>>, %arg3: memref<2x1xf32, #tpu.memory_space<vmem>>, %arg4: memref<16x2xf32, #tpu.memory_space<vmem>>, %arg5: memref<16x1xf32, #tpu.memory_space<vmem>>, %arg6: memref<1x16x256xf32, #tpu.memory_space<vmem>>) attributes {dimension_semantics = [#tpu.dimension_semantics<parallel>], iteration_bounds = array<i64: 2>, scalar_prefetch = 0 : i64, scratch_operands = 0 : i64, tpu.core_type = #tpu.core_type<tc>, window_params = [{transform_indices = @transform_0, window_bounds = array<i64: 1, 16, 256>}, {pipeline_mode = #tpu.pipeline_mode<synchronous>, transform_indices = @transform_1, window_bounds = array<i64: 2, 16>}, {pipeline_mode = #tpu.pipeline_mode<synchronous>, transform_indices = @transform_2, window_bounds = array<i64: 2, 1>}, {pipeline_mode = #tpu.pipeline_mode<synchronous>, transform_indices = @transform_3, window_bounds = array<i64: 16, 2>}, {pipeline_mode = #tpu.pipeline_mode<synchronous>, transform_indices = @transform_4, window_bounds = array<i64: 16, 1>}, {transform_indices = @transform_5, window_bounds = array<i64: 1, 16, 256>}]} {
    %c0 = arith.constant 0 : index
    %c0_0 = arith.constant 0 : index
    %c0_1 = arith.constant 0 : index
    %0 = vector.load %arg1[%c0, %c0_0, %c0_1] : memref<1x16x256xf32, #tpu.memory_space<vmem>>, vector<1x16x256xf32>
    %1 = vector.shape_cast %0 : vector<1x16x256xf32> to vector<16x256xf32>
    %cst = arith.constant dense<0.000000e+00> : vector<16xf32>
    %2 = vector.multi_reduction <add>, %1, %cst [1] : vector<16x256xf32> to vector<16xf32>
    %3 = vector.shape_cast %2 : vector<16xf32> to vector<16x1xf32>
    %cst_2 = arith.constant 3.906250e-03 : f32
    %4 = vector.broadcast %cst_2 : f32 to vector<16x1xf32>
    %5 = arith.mulf %3, %4 : vector<16x1xf32>
    %c0_3 = arith.constant 0 : index
    %c0_4 = arith.constant 0 : index
    %6 = vector.load %arg2[%c0_3, %c0_4] : memref<2x16xf32, #tpu.memory_space<vmem>>, vector<2x16xf32>
    %cst_5 = arith.constant dense<0.000000e+00> : vector<2x1xf32>
    %7 = tpu.matmul %6, %5, %cst_5 {dimension_numbers = #tpu.dot_dimension_numbers<[1], [0], [0], [1], [0, 0, 1, 1], [], []>} : vector<2x16xf32>, vector<16x1xf32>, vector<2x1xf32> -> vector<2x1xf32>
    %c0_6 = arith.constant 0 : index
    %c0_7 = arith.constant 0 : index
    %8 = vector.load %arg3[%c0_6, %c0_7] : memref<2x1xf32, #tpu.memory_space<vmem>>, vector<2x1xf32>
    %9 = arith.addf %7, %8 : vector<2x1xf32>
    %cst_8 = arith.constant 0.000000e+00 : f32
    %10 = vector.broadcast %cst_8 : f32 to vector<2x1xf32>
    %11 = arith.maximumf %9, %10 : vector<2x1xf32>
    %c0_9 = arith.constant 0 : index
    %c0_10 = arith.constant 0 : index
    %12 = vector.load %arg4[%c0_9, %c0_10] : memref<16x2xf32, #tpu.memory_space<vmem>>, vector<16x2xf32>
    %cst_11 = arith.constant dense<0.000000e+00> : vector<16x1xf32>
    %13 = tpu.matmul %12, %11, %cst_11 {dimension_numbers = #tpu.dot_dimension_numbers<[1], [0], [0], [1], [0, 0, 1, 1], [], []>} : vector<16x2xf32>, vector<2x1xf32>, vector<16x1xf32> -> vector<16x1xf32>
    %c0_12 = arith.constant 0 : index
    %c0_13 = arith.constant 0 : index
    %14 = vector.load %arg5[%c0_12, %c0_13] : memref<16x1xf32, #tpu.memory_space<vmem>>, vector<16x1xf32>
    %15 = arith.addf %13, %14 : vector<16x1xf32>
    %16 = arith.negf %15 : vector<16x1xf32>
    %17 = math.exp %16 : vector<16x1xf32>
    %cst_14 = arith.constant 1.000000e+00 : f32
    %18 = vector.broadcast %cst_14 : f32 to vector<16x1xf32>
    %19 = arith.addf %18, %17 : vector<16x1xf32>
    %20 = arith.divf %18, %19 : vector<16x1xf32>
    %21 = vector.broadcast %20 : vector<16x1xf32> to vector<16x256xf32>
    %22 = arith.mulf %1, %21 : vector<16x256xf32>
    %c0_15 = arith.constant 0 : index
    %c0_16 = arith.constant 0 : index
    %c0_17 = arith.constant 0 : index
    %23 = vector.load %arg6[%c0_15, %c0_16, %c0_17] : memref<1x16x256xf32, #tpu.memory_space<vmem>>, vector<1x16x256xf32>
    %24 = vector.shape_cast %23 : vector<1x16x256xf32> to vector<16x256xf32>
    %25 = vector.shape_cast %22 : vector<16x256xf32> to vector<1x16x256xf32>
    tpu.vector_store %arg6[%c0_15, %c0_16, %c0_17], %25 {strides = array<i32>} : memref<1x16x256xf32, #tpu.memory_space<vmem>>, vector<1x16x256xf32>,
    return
  }
  func.func @transform_0(%arg0: i32) -> (i32, i32, i32) {
    %c0_i32 = arith.constant 0 : i32
    %c0_i32_0 = arith.constant 0 : i32
    %c0_i32_1 = arith.constant 0 : i32
    return %arg0, %c0_i32, %c0_i32_0 : i32, i32, i32
  }
  func.func @transform_1(%arg0: i32) -> (i32, i32) {
    %c0_i32 = arith.constant 0 : i32
    %c0_i32_0 = arith.constant 0 : i32
    %c0_i32_1 = arith.constant 0 : i32
    return %c0_i32, %c0_i32_0 : i32, i32
  }
  func.func @transform_2(%arg0: i32) -> (i32, i32) {
    %c0_i32 = arith.constant 0 : i32
    %c0_i32_0 = arith.constant 0 : i32
    %c0_i32_1 = arith.constant 0 : i32
    return %c0_i32, %c0_i32_0 : i32, i32
  }
  func.func @transform_3(%arg0: i32) -> (i32, i32) {
    %c0_i32 = arith.constant 0 : i32
    %c0_i32_0 = arith.constant 0 : i32
    %c0_i32_1 = arith.constant 0 : i32
    return %c0_i32, %c0_i32_0 : i32, i32
  }
  func.func @transform_4(%arg0: i32) -> (i32, i32) {
    %c0_i32 = arith.constant 0 : i32
    %c0_i32_0 = arith.constant 0 : i32
    %c0_i32_1 = arith.constant 0 : i32
    return %c0_i32, %c0_i32_0 : i32, i32
  }
  func.func @transform_5(%arg0: i32) -> (i32, i32, i32) {
    %c0_i32 = arith.constant 0 : i32
    %c0_i32_0 = arith.constant 0 : i32
    %c0_i32_1 = arith.constant 0 : i32
    return %arg0, %c0_i32, %c0_i32_0 : i32, i32, i32
  }
}

</mosaic_0001>

<llo_original>
// kernel: tpu_custom_call.1
$region0: #{tpu_custom_call.1}
  #allocation0 [shape = 'u32[]', space=smem, size = 0x4, offset = 0x4, fixed_abs, tag = 'smem constant byte address 0x4 - core index']
  #allocation1 [shape = 'u32[144,128]{1,0:T(1,128)}', space=vmem, size = 0x12000, scoped, tag = 'internal scratch']
  %s0 = inlined_call_operand.hbm [shape: f32[2,16,256], index: 0, kind: input, shape index: {}]
  %s1 = inlined_call_operand.vmem [shape: f32[2,16], index: 1, kind: input, shape index: {}]
  %s2 = inlined_call_operand.vmem [shape: f32[2,1], index: 2, kind: input, shape index: {}]
  %s3 = inlined_call_operand.vmem [shape: f32[16,2], index: 3, kind: input, shape index: {}]
  %s4 = inlined_call_operand.vmem [shape: f32[16,1], index: 4, kind: input, shape index: {}]
  %s5 = inlined_call_operand.hbm [shape: f32[2,16,256], index: 5, kind: output, shape index: {}]
  %s6 = sld [smem:[#allocation0]]
  $region57: #{tpu_custom_call.1} parent=0
    _
  %s8 = ssub.s32 1, %s6
  %s9 = scalar_select 0, %s8, %s6
  $region1: #{tpu_custom_call.1} parent=0
    #allocation2 [shape = 'u8[32768]{0}', space=vmem, size = 0x8000, scoped, tag = 'input window, operand 0']
    #allocation3 [shape = 's32[2]{0}', space=sflag, size = 0x8, scoped, tag = 'scoped memory for tpu_custom_call.1']
    #allocation4 [shape = 's32[2]{0}', space=sflag, size = 0x8, scoped, tag = 'scoped memory for tpu_custom_call.1']
    #allocation5 [shape = 'u8[32768]{0}', space=vmem, size = 0x8000, scoped, tag = 'output window, operand 0']
    %10 = vsyncpa [#allocation3], 0
    %s11 = scalar_lea.sflag [#allocation3], 1
    %12 = vsyncpa %s11, 0
    %13 = vsyncpa [#allocation4], 0
    %s14 = scalar_lea.sflag [#allocation4], 1
    %15 = vsyncpa %s14, 0
    loop: start=0, step=1, limit=4
    $region2: #{tpu_custom_call.1} parent=1 // loop_pre_header
      _
    $region3: #{tpu_custom_call.1} parent=1 // loop_header
      %s17 = sphi 0, %s21
      %p18 = scmp.ge.s32.totalorder %s17, 4
      %s27 = sphi 0, %s29
      %s30 = sphi 0, %s27
      %s31 = sphi 0, %s30
      %s47 = sphi 0, %s31
      %s51 = sphi 0, %s51
      %s53 = sphi 0, %s51
      %s54 = sphi 0, %s53
      %s68 = sphi 0, %s54
      %s72 = sphi 0, %s72
      %s74 = sphi 0, %s72
      %s75 = sphi 0, %s74
      %s89 = sphi 0, %s75
      %s93 = sphi 0, %s93
      %s95 = sphi 0, %s93
      %s96 = sphi 0, %s95
      %s110 = sphi 0, %s96
      %s114 = sphi 0, %s114
      %s116 = sphi 0, %s114
      %s117 = sphi 0, %s116
      %s131 = sphi 0, %s117
      %s137 = sphi 0, %s139
      %s140 = sphi 0, %s137
      %s141 = sphi 0, %s140
      %s157 = sphi 0, %s141
    $region4: #{tpu_custom_call.1} parent=1 // loop_header_branch
      %20 = sbr.rel (%p18) target = $region8
    $region5: #{tpu_custom_call.1} parent=1 // loop_body
      %s22 = ssub.s32 %s17, 1
      %s23 = ssub.s32 %s17, 2
      %s24 = sadd.s32 %s17, 1
      %s25 = ssub.s32 %s17, %s24
      %p26 = scmp.eq.s32.totalorder %s25, 0
      %s28 = sadd.s32 %s27, 1
      %s29 = scalar_select %p26, %s27, %s28
      %p32 = pneg %p26
      %p33 = scmp.eq.s32.totalorder %s17, 1
      %p34 = por %p32, %p33
      %p35 = scmp.ne.s32.totalorder %s27, %s30
      %p36 = scmp.eq.s32.totalorder %s17, 0
      %p37 = por %p35, %p36
      %p38 = scmp.ne.s32.totalorder %s27, %s30
      %p39 = scmp.eq.s32.totalorder %s22, 1
      %p40 = por %p38, %p39
      %p41 = scmp.ne.s32.totalorder %s30, %s31
      %p42 = scmp.eq.s32.totalorder %s22, 0
      %p43 = por %p41, %p42
      %p44 = scmp.ne.s32.totalorder %s30, %s31
      %p45 = scmp.eq.s32.totalorder %s23, 1
      %p46 = por %p44, %p45
      %p48 = scmp.ne.s32.totalorder %s31, %s47
      %p49 = scmp.eq.s32.totalorder %s23, 0
      %p50 = por %p48, %p49
      %s52 = sadd.s32 %s51, 1
      %p55 = scmp.eq.s32.totalorder %s17, 1
      %p56 = scmp.ne.s32.totalorder %s51, %s53
      %p57 = scmp.eq.s32.totalorder %s17, 0
      %p58 = por %p56, %p57
      %p59 = scmp.ne.s32.totalorder %s51, %s53
      %p60 = scmp.eq.s32.totalorder %s22, 1
      %p61 = por %p59, %p60
      %p62 = scmp.ne.s32.totalorder %s53, %s54
      %p63 = scmp.eq.s32.totalorder %s22, 0
      %p64 = por %p62, %p63
      %p65 = scmp.ne.s32.totalorder %s53, %s54
      %p66 = scmp.eq.s32.totalorder %s23, 1
      %p67 = por %p65, %p66
      %p69 = scmp.ne.s32.totalorder %s54, %s68
      %p70 = scmp.eq.s32.totalorder %s23, 0
      %p71 = por %p69, %p70
      %s73 = sadd.s32 %s72, 1
      %p76 = scmp.eq.s32.totalorder %s17, 1
      %p77 = scmp.ne.s32.totalorder %s72, %s74
      %p78 = scmp.eq.s32.totalorder %s17, 0
      %p79 = por %p77, %p78
      %p80 = scmp.ne.s32.totalorder %s72, %s74
      %p81 = scmp.eq.s32.totalorder %s22, 1
      %p82 = por %p80, %p81
      %p83 = scmp.ne.s32.totalorder %s74, %s75
      %p84 = scmp.eq.s32.totalorder %s22, 0
      %p85 = por %p83, %p84
      %p86 = scmp.ne.s32.totalorder %s74, %s75
      %p87 = scmp.eq.s32.totalorder %s23, 1
      %p88 = por %p86, %p87
      %p90 = scmp.ne.s32.totalorder %s75, %s89
      %p91 = scmp.eq.s32.totalorder %s23, 0
      %p92 = por %p90, %p91
      %s94 = sadd.s32 %s93, 1
      %p97 = scmp.eq.s32.totalorder %s17, 1
      %p98 = scmp.ne.s32.totalorder %s93, %s95
      %p99 = scmp.eq.s32.totalorder %s17, 0
      %p100 = por %p98, %p99
      %p101 = scmp.ne.s32.totalorder %s93, %s95
      %p102 = scmp.eq.s32.totalorder %s22, 1
      %p103 = por %p101, %p102
      %p104 = scmp.ne.s32.totalorder %s95, %s96
      %p105 = scmp.eq.s32.totalorder %s22, 0
      %p106 = por %p104, %p105
      %p107 = scmp.ne.s32.totalorder %s95, %s96
      %p108 = scmp.eq.s32.totalorder %s23, 1
      %p109 = por %p107, %p108
      %p111 = scmp.ne.s32.totalorder %s96, %s110
      %p112 = scmp.eq.s32.totalorder %s23, 0
      %p113 = por %p111, %p112
      %s115 = sadd.s32 %s114, 1
      %p118 = scmp.eq.s32.totalorder %s17, 1
      %p119 = scmp.ne.s32.totalorder %s114, %s116
      %p120 = scmp.eq.s32.totalorder %s17, 0
      %p121 = por %p119, %p120
      %p122 = scmp.ne.s32.totalorder %s114, %s116
      %p123 = scmp.eq.s32.totalorder %s22, 1
      %p124 = por %p122, %p123
      %p125 = scmp.ne.s32.totalorder %s116, %s117
      %p126 = scmp.eq.s32.totalorder %s22, 0
      %p127 = por %p125, %p126
      %p128 = scmp.ne.s32.totalorder %s116, %s117
      %p129 = scmp.eq.s32.totalorder %s23, 1
      %p130 = por %p128, %p129
      %p132 = scmp.ne.s32.totalorder %s117, %s131
      %p133 = scmp.eq.s32.totalorder %s23, 0
      %p134 = por %p132, %p133
      %s135 = ssub.s32 %s17, %s24
      %p136 = scmp.eq.s32.totalorder %s135, 0
      %s138 = sadd.s32 %s137, 1
      %s139 = scalar_select %p136, %s137, %s138
      %p142 = pneg %p136
      %p143 = scmp.eq.s32.totalorder %s17, 1
      %p144 = por %p142, %p143
      %p145 = scmp.ne.s32.totalorder %s137, %s140
      %p146 = scmp.eq.s32.totalorder %s17, 0
      %p147 = por %p145, %p146
      %p148 = scmp.ne.s32.totalorder %s137, %s140
      %p149 = scmp.eq.s32.totalorder %s22, 1
      %p150 = por %p148, %p149
      %p151 = scmp.ne.s32.totalorder %s140, %s141
      %p152 = scmp.eq.s32.totalorder %s22, 0
      %p153 = por %p151, %p152
      %p154 = scmp.ne.s32.totalorder %s140, %s141
      %p155 = scmp.eq.s32.totalorder %s23, 1
      %p156 = por %p154, %p155
      %p158 = scmp.ne.s32.totalorder %s141, %s157
      %p159 = scmp.eq.s32.totalorder %s23, 0
      %p160 = por %p158, %p159
      %p161 = scmp.le.s32.totalorder 1, %s17
      %p162 = scmp.lt.s32.totalorder %s17, 3
      %p163 = pnand %p161, %p162
      %p164 = pneg %p163
      // Predicated region
      $region9: #{tpu_custom_call.1} parent=5 // pred_check
        _
      $region10: #{tpu_custom_call.1} parent=5 // pred_check_branch
        %166 = sbr.rel (%p163) target = $region12
      $region11: #{tpu_custom_call.1} parent=5 // pred_region
        %s167 = ssub.s32 %s17, 1
        // Predicated region
        $region13: #{tpu_custom_call.1} parent=11 // pred_check
          %p168 = pneg %p64
        $region14: #{tpu_custom_call.1} parent=11 // pred_check_branch
          %170 = sbr.rel (%p168) target = $region16
        $region15: #{tpu_custom_call.1} parent=11 // pred_region
          _
        $region16: #{tpu_custom_call.1} parent=11 // pred_fallthru
          _
        // Predicated region
        $region17: #{tpu_custom_call.1} parent=11 // pred_check
          %p171 = pneg %p85
        $region18: #{tpu_custom_call.1} parent=11 // pred_check_branch
          %173 = sbr.rel (%p171) target = $region20
        $region19: #{tpu_custom_call.1} parent=11 // pred_region
          _
        $region20: #{tpu_custom_call.1} parent=11 // pred_fallthru
          _
        // Predicated region
        $region21: #{tpu_custom_call.1} parent=11 // pred_check
          %p174 = pneg %p106
        $region22: #{tpu_custom_call.1} parent=11 // pred_check_branch
          %176 = sbr.rel (%p174) target = $region24
        $region23: #{tpu_custom_call.1} parent=11 // pred_region
          _
        $region24: #{tpu_custom_call.1} parent=11 // pred_fallthru
          _
        // Predicated region
        $region25: #{tpu_custom_call.1} parent=11 // pred_check
          %p177 = pneg %p127
        $region26: #{tpu_custom_call.1} parent=11 // pred_check_branch
          %179 = sbr.rel (%p177) target = $region28
        $region27: #{tpu_custom_call.1} parent=11 // pred_region
          _
        $region28: #{tpu_custom_call.1} parent=11 // pred_fallthru
          _
      $region12: #{tpu_custom_call.1} parent=5 // pred_fallthru
        _
      %p180 = scmp.lt.s32.totalorder %s17, 2
      // Predicated region
      $region29: #{tpu_custom_call.1} parent=5 // pred_check
        %p181 = pneg %p180
      $region30: #{tpu_custom_call.1} parent=5 // pred_check_branch
        %183 = sbr.rel (%p181) target = $region32
      $region31: #{tpu_custom_call.1} parent=5 // pred_region
        // Predicated region
        $region33: #{tpu_custom_call.1} parent=31 // pred_check
          %p184 = pneg %p37
        $region34: #{tpu_custom_call.1} parent=31 // pred_check_branch
          %186 = sbr.rel (%p184) target = $region36
        $region35: #{tpu_custom_call.1} parent=31 // pred_region
          %s187 = sand.u32 %s27, 1
          %s188 = scalar_lea.sflag [#allocation3], %s187
          %s189 = sand.u32 %s27, 1
          %s190 = smul.addr %s189, 32
          %s191 = scalar_lea.vmem [#allocation2], %s190
          %s193 = ssub.s32 512, 512
          %194 = vsyncadd %s188, %s193
          %s195 = smul.addr %s17, 4
          %s196 = smul.addr %s195, 128
          %s197 = scalar_lea.hbm %s0, %s196
          %s198 = sshll.u32 %s191, 4
          %s199 = int_to_ptr.vmem [resolvable:$true] %s198
          %204 = dma.hbm_to_vmem [thread:$0]  %s197, 512, %s199, %s188, 256, 256, 16
        $region36: #{tpu_custom_call.1} parent=31 // pred_fallthru
          _
      $region32: #{tpu_custom_call.1} parent=5 // pred_fallthru
        _
      %p205 = scmp.le.s32.totalorder 1, %s17
      %p206 = scmp.lt.s32.totalorder %s17, 3
      %p207 = pnand %p205, %p206
      %p208 = pneg %p207
      // Predicated region
      $region37: #{tpu_custom_call.1} parent=5 // pred_check
        _
      $region38: #{tpu_custom_call.1} parent=5 // pred_check_branch
        %210 = sbr.rel (%p207) target = $region40
      $region39: #{tpu_custom_call.1} parent=5 // pred_region
        %s211 = ssub.s32 %s17, 1
        %s212 = sand.u32 %s30, 1
        %s213 = scalar_lea.sflag [#allocation3], %s212
        %s214 = sand.u32 %s30, 1
        %s215 = smul.addr %s214, 32
        %s216 = scalar_lea.vmem [#allocation2], %s215
        // Predicated region
        $region41: #{tpu_custom_call.1} parent=39 // pred_check
          %p217 = pneg %p43
        $region42: #{tpu_custom_call.1} parent=39 // pred_check_branch
          %219 = sbr.rel (%p217) target = $region44
        $region43: #{tpu_custom_call.1} parent=39 // pred_region
          %220 = dma.done %s213, 512
        $region44: #{tpu_custom_call.1} parent=39 // pred_fallthru
          _
        %s221 = sand.u32 %s30, 1
        %s222 = scalar_lea.sflag [#allocation3], %s221
        %s223 = sand.u32 %s30, 1
        %s224 = smul.addr %s223, 32
        %s225 = scalar_lea.vmem [#allocation2], %s224
        %p226 = pneg %p43
        %p227 = pneg %p40
        %p228 = pneg %p64
        %p229 = pneg %p61
        %p230 = pneg %p85
        %p231 = pneg %p82
        %p232 = pneg %p106
        %p233 = pneg %p103
        %p234 = pneg %p127
        %p235 = pneg %p124
        %p236 = pneg %p153
        %p237 = pneg %p150
        %s238 = sand.u32 %s140, 1
        %s239 = scalar_lea.sflag [#allocation4], %s238
        %s240 = sand.u32 %s140, 1
        %s241 = smul.addr %s240, 32
        %s242 = scalar_lea.vmem [#allocation5], %s241
        %v243 = vld [vmem:[%s216] sm:$0xff]
        %v244 = vld [vmem:[%s216 + $0x8] sm:$0xff]
        %v245 = vld [vmem:[%s216 + $0x10] sm:$0xff]
        %v246 = vld [vmem:[%s216 + $0x18] sm:$0xff]
        %v247 = vadd.f32 %v243, %v244
        %248 = vadd.xlane.f32.xlu0 %v247
        %v249 = vpop.xlane.xlu0 %248
        %v250 = vadd.f32 %v245, %v246
        %251 = vadd.xlane.f32.xlu0 %v250
        %v252 = vpop.xlane.xlu0 %251
        %v253 = vmul.f32 %v249, 0.00390625
        %v254 = vmul.f32 %v252, 0.00390625
        %v255 = vld [vmem:[%s1] sm:$0x3]
        %v256 = vld [vmem:[%s2] sm:$0x3]
        %vm257 = vcmask 130048
        %v259 = vsel %vm257, %v255, 0
        %261 = vmatprep.subr.mxu0 0.0
        %262 = vmatpush1.msra.mxu0 %v253
        %263 = vmatprep.subr.mxu0 0.0
        %264 = vmatpush1.msra.mxu0 %v254
        %265 = vmatprep.subr.mxu0 0.0
        %266 = vmatpush1.msra.mxu0 0.0
        %267 = vmatprep.subr.mxu0 0.0
        %268 = vmatpush1.msra.mxu0 0.0
        %269 = vmatprep.subr.mxu0 0.0
        %270 = vmatpush1.msra.mxu0 0.0
        %271 = vmatprep.subr.mxu0 0.0
        %272 = vmatpush1.msra.mxu0 0.0
        %273 = vmatprep.subr.mxu0 0.0
        %274 = vmatpush1.msra.mxu0 0.0
        %275 = vmatprep.subr.mxu0 0.0
        %276 = vmatpush1.msra.mxu0 0.0
        %277 = vmatprep.subr.mxu0 0.0
        %278 = vmatpush1.msra.mxu0 0.0
        %279 = vmatprep.subr.mxu0 0.0
        %280 = vmatpush1.msra.mxu0 0.0
        %281 = vmatprep.subr.mxu0 0.0
        %282 = vmatpush1.msra.mxu0 0.0
        %283 = vmatprep.subr.mxu0 0.0
        %284 = vmatpush1.msra.mxu0 0.0
        %285 = vmatprep.subr.mxu0 0.0
        %286 = vmatpush1.msra.mxu0 0.0
        %287 = vmatprep.subr.mxu0 0.0
        %288 = vmatpush1.msra.mxu0 0.0
        %289 = vmatprep.subr.mxu0 0.0
        %290 = vmatpush1.msra.mxu0 0.0
        %291 = vmatprep.subr.mxu0 0.0
        %292 = vmatpush1.msra.mxu0 0.0
        %293 = vmatprep.subr.mxu0 0.0
        %294 = vmatpush1.msra.mxu0 0.0
        %295 = vmatprep.subr.mxu0 0.0
        %296 = vmatpush1.msra.mxu0 0.0
        %297 = vmatprep.subr.mxu0 0.0
        %298 = vmatpush1.msra.mxu0 0.0
        %299 = vmatprep.subr.mxu0 0.0
        %300 = vmatpush1.msra.mxu0 0.0
        %301 = vmatprep.subr.mxu0 0.0
        %302 = vmatpush1.msra.mxu0 0.0
        %303 = vmatprep.subr.mxu0 0.0
        %304 = vmatpush1.msra.mxu0 0.0
        %305 = vmatprep.subr.mxu0 0.0
        %306 = vmatpush1.msra.mxu0 0.0
        %307 = vmatprep.subr.mxu0 0.0
        %308 = vmatpush1.msra.mxu0 0.0
        %309 = vmatprep.subr.mxu0 0.0
        %310 = vmatpush1.msra.mxu0 0.0
        %311 = vmatprep.subr.mxu0 0.0
        %312 = vmatpush1.msra.mxu0 0.0
        %313 = vmatprep.subr.mxu0 0.0
        %314 = vmatpush1.msra.mxu0 0.0
        %315 = vmatprep.subr.mxu0 0.0
        %316 = vmatpush1.msra.mxu0 0.0
        %317 = vmatprep.subr.mxu0 0.0
        %318 = vmatpush1.msra.mxu0 0.0
        %319 = vmatprep.subr.mxu0 0.0
        %320 = vmatpush1.msra.mxu0 0.0
        %321 = vmatprep.subr.mxu0 0.0
        %322 = vmatpush1.msra.mxu0 0.0
        %323 = vmatprep.subr.mxu0 0.0
        %324 = vmatpush1.msra.mxu0 0.0
        %325 = vmatprep.mubr.f32.mxu0 0.0
        %326 = vmatmul.mubr.f32.gmra.mrb[0].mxu0 %v259
        %v327 = vpop.f32.mrb[0].mxu0
        %v328 = vadd.f32 %v256, %v327
        %v329 = vpop.f32.mrb[0].mxu0
        %330 = vdwg.mxu0
        %v331 = vmax.f32 %v328, 0.0
        %v332 = vld [vmem:[%s3] sm:$0xff]
        %v333 = vld [vmem:[%s3 + $0x8] sm:$0xff]
        %v334 = vld [vmem:[%s4] sm:$0xff]
        %v335 = vld [vmem:[%s4 + $0x8] sm:$0xff]
        %vm336 = vcmask 15360
        %v338 = vsel %vm336, %v332, 0
        %v341 = vsel %vm336, %v333, 0
        %vm343 = vcmask 1041408
        %v345 = vsel %vm343, %v331, 0
        %347 = vmatprep.subr.mxu0 0.0
        %348 = vmatpush1.msra.mxu0 %v345
        %349 = vmatprep.subr.mxu0 0.0
        %350 = vmatpush1.msra.mxu0 0.0
        %351 = vmatprep.subr.mxu0 0.0
        %352 = vmatpush1.msra.mxu0 0.0
        %353 = vmatprep.subr.mxu0 0.0
        %354 = vmatpush1.msra.mxu0 0.0
        %355 = vmatprep.subr.mxu0 0.0
        %356 = vmatpush1.msra.mxu0 0.0
        %357 = vmatprep.subr.mxu0 0.0
        %358 = vmatpush1.msra.mxu0 0.0
        %359 = vmatprep.subr.mxu0 0.0
        %360 = vmatpush1.msra.mxu0 0.0
        %361 = vmatprep.subr.mxu0 0.0
        %362 = vmatpush1.msra.mxu0 0.0
        %363 = vmatprep.subr.mxu0 0.0
        %364 = vmatpush1.msra.mxu0 0.0
        %365 = vmatprep.subr.mxu0 0.0
        %366 = vmatpush1.msra.mxu0 0.0
        %367 = vmatprep.subr.mxu0 0.0
        %368 = vmatpush1.msra.mxu0 0.0
        %369 = vmatprep.subr.mxu0 0.0
        %370 = vmatpush1.msra.mxu0 0.0
        %371 = vmatprep.subr.mxu0 0.0
        %372 = vmatpush1.msra.mxu0 0.0
        %373 = vmatprep.subr.mxu0 0.0
        %374 = vmatpush1.msra.mxu0 0.0
        %375 = vmatprep.subr.mxu0 0.0
        %376 = vmatpush1.msra.mxu0 0.0
        %377 = vmatprep.subr.mxu0 0.0
        %378 = vmatpush1.msra.mxu0 0.0
        %379 = vmatprep.subr.mxu0 0.0
        %380 = vmatpush1.msra.mxu0 0.0
        %381 = vmatprep.subr.mxu0 0.0
        %382 = vmatpush1.msra.mxu0 0.0
        %383 = vmatprep.subr.mxu0 0.0
        %384 = vmatpush1.msra.mxu0 0.0
        %385 = vmatprep.subr.mxu0 0.0
        %386 = vmatpush1.msra.mxu0 0.0
        %387 = vmatprep.subr.mxu0 0.0
        %388 = vmatpush1.msra.mxu0 0.0
        %389 = vmatprep.subr.mxu0 0.0
        %390 = vmatpush1.msra.mxu0 0.0
        %391 = vmatprep.subr.mxu0 0.0
        %392 = vmatpush1.msra.mxu0 0.0
        %393 = vmatprep.subr.mxu0 0.0
        %394 = vmatpush1.msra.mxu0 0.0
        %395 = vmatprep.subr.mxu0 0.0
        %396 = vmatpush1.msra.mxu0 0.0
        %397 = vmatprep.subr.mxu0 0.0
        %398 = vmatpush1.msra.mxu0 0.0
        %399 = vmatprep.subr.mxu0 0.0
        %400 = vmatpush1.msra.mxu0 0.0
        %401 = vmatprep.subr.mxu0 0.0
        %402 = vmatpush1.msra.mxu0 0.0
        %403 = vmatprep.subr.mxu0 0.0
        %404 = vmatpush1.msra.mxu0 0.0
        %405 = vmatprep.subr.mxu0 0.0
        %406 = vmatpush1.msra.mxu0 0.0
        %407 = vmatprep.subr.mxu0 0.0
        %408 = vmatpush1.msra.mxu0 0.0
        %409 = vmatprep.subr.mxu0 0.0
        %410 = vmatpush1.msra.mxu0 0.0
        %411 = vmatprep.mubr.f32.mxu0 0.0
        %412 = vmatmul.mubr.f32.gmra.mrb[0].mxu0 %v338
        %v413 = vpop.f32.mrb[0].mxu0
        %v414 = vadd.f32 %v334, %v413
        %v415 = vpop.f32.mrb[0].mxu0
        %416 = vmatprep.mubr.f32.mxu0 0.0
        %417 = vmatmul.mubr.f32.gmra.mrb[0].mxu0 %v341
        %v418 = vpop.f32.mrb[0].mxu0
        %v419 = vadd.f32 %v335, %v418
        %v420 = vpop.f32.mrb[0].mxu0
        %421 = vdwg.mxu0
        %v422 = vxor.u32 %v414, 2147483648
        %v423 = vxor.u32 %v419, 2147483648
        %v424 = vmul.f32 %v422, 1.442695
        %v425 = vpow.pop %v424
        %v426 = vmul.f32 %v423, 1.442695
        %v427 = vpow.pop %v426
        %v428 = vadd.f32 %v425, 1.0
        %v429 = vadd.f32 %v427, 1.0
        %v430 = vrcp.pop %v428
        %v431 = vmul.f32 1.0, %v430
        %v432 = vrcp.pop %v429
        %v433 = vmul.f32 1.0, %v432
        %435 = vset.pattern.permute.xlu0 0
        %436 = vperm.xlu0 %435, %v431
        %v437 = vpop.permute.xlu0 %436
        %440 = vset.pattern.permute.xlu0 0
        %441 = vperm.xlu0 %440, %v433
        %v442 = vpop.permute.xlu0 %441
        %v444 = vmul.f32 %v243, %v437
        %v445 = vmul.f32 %v244, %v437
        %v446 = vmul.f32 %v245, %v442
        %v447 = vmul.f32 %v246, %v442
        %448 = vst [vmem:[%s242] sm:$0xff] %v444
        %449 = vst [vmem:[%s242 + $0x8] sm:$0xff] %v445
        %450 = vst [vmem:[%s242 + $0x10] sm:$0xff] %v446
        %451 = vst [vmem:[%s242 + $0x18] sm:$0xff] %v447
        %s452 = sand.u32 %s140, 1
        %s453 = scalar_lea.sflag [#allocation4], %s452
        %s454 = sand.u32 %s140, 1
        %s455 = smul.addr %s454, 32
        %s456 = scalar_lea.vmem [#allocation5], %s455
        // Predicated region
        $region45: #{tpu_custom_call.1} parent=39 // pred_check
          %p457 = pneg %p150
        $region46: #{tpu_custom_call.1} parent=39 // pred_check_branch
          %459 = sbr.rel (%p457) target = $region48
        $region47: #{tpu_custom_call.1} parent=39 // pred_region
          %s461 = ssub.s32 512, 512
          %462 = vsyncadd %s453, %s461
          %s463 = smul.addr %s22, 4
          %s464 = smul.addr %s463, 128
          %s465 = scalar_lea.hbm %s5, %s464
          %s466 = sshll.u32 %s456, 4
          %s467 = int_to_ptr.vmem [resolvable:$true] %s466
          %472 = dma.vmem_to_hbm [thread:$0]  %s467, 512, %s465, %s453, 256, 256, 16
        $region48: #{tpu_custom_call.1} parent=39 // pred_fallthru
          _
      $region40: #{tpu_custom_call.1} parent=5 // pred_fallthru
        _
      %p473 = scmp.le.s32.totalorder 2, %s17
      // Predicated region
      $region49: #{tpu_custom_call.1} parent=5 // pred_check
        %p474 = pneg %p473
      $region50: #{tpu_custom_call.1} parent=5 // pred_check_branch
        %476 = sbr.rel (%p474) target = $region52
      $region51: #{tpu_custom_call.1} parent=5 // pred_region
        %s477 = ssub.s32 %s17, 2
        // Predicated region
        $region53: #{tpu_custom_call.1} parent=51 // pred_check
          %p478 = pneg %p156
        $region54: #{tpu_custom_call.1} parent=51 // pred_check_branch
          %480 = sbr.rel (%p478) target = $region56
        $region55: #{tpu_custom_call.1} parent=51 // pred_region
          %s481 = sand.u32 %s141, 1
          %s482 = scalar_lea.sflag [#allocation4], %s481
          %s483 = sand.u32 %s141, 1
          %s484 = smul.addr %s483, 32
          %s485 = scalar_lea.vmem [#allocation5], %s484
          %486 = dma.done %s482, 512
        $region56: #{tpu_custom_call.1} parent=51 // pred_fallthru
          _
      $region52: #{tpu_custom_call.1} parent=5 // pred_fallthru
        _
    $region6: #{tpu_custom_call.1} parent=1 // loop_footer
      %s21 = sadd.s32 1, %s17
    $region7: #{tpu_custom_call.1} parent=1 // loop_footer_branch
      %16 = sbr.rel target = $region3
    $region8: #{tpu_custom_call.1} parent=1 // loop_exit
      _
    %487 = vsyncpa [#allocation3], 1
    %s488 = scalar_lea.sflag [#allocation3], 1
    %489 = vsyncpa %s488, 1
    %490 = vsyncpa [#allocation4], 1
    %s491 = scalar_lea.sflag [#allocation4], 1
    %492 = vsyncpa %s491, 1

</llo_original>
